<compile_context>
chip_gen: v7x
topology: tpu7x:2x2x1
jax: 0.10.0
libtpu: 0.0.40
codegen_flags: <defaults>
</compile_context>

<pallas_src>
import functools

import jax
import jax.numpy as jnp
from jax.experimental import pallas as pl
from jax.experimental.pallas import tpu as pltpu


def _gemm_reduce_kernel(x_ref, w_ref, o_ref, acc_ref):
    """One grid step: one (rank, K-tile) partial product of a (tm, tn) output tile.

    x_ref  : (tm, tk) bfloat16   activation tile of rank r
    w_ref  : (tn, tk) bfloat16   weight tile of rank r
    o_ref  : (tm, tn) bfloat16   output tile (written once, on last reduction step)
    acc_ref: (tm, tn) float32    VMEM accumulator (resident across rank/K steps)
    """
    r = pl.program_id(2)   # rank axis (the emulated all-reduce)
    k = pl.program_id(3)   # K-tile axis (contraction)

    @pl.when((r == 0) & (k == 0))
    def _():
        acc_ref[...] = jnp.zeros_like(acc_ref)

    # bf16 tiles fed directly to the MXU, contracting the shared K (lane) axis on
    # both operands (no explicit .T, no upcast); f32 accumulation.
    acc_ref[...] += jax.lax.dot_general(
        x_ref[...], w_ref[...],
        dimension_numbers=(((1,), (1,)), ((), ())),
        preferred_element_type=jnp.float32)

    @pl.when((r == pl.num_programs(2) - 1) & (k == pl.num_programs(3) - 1))
    def _():
        o_ref[...] = acc_ref[...].astype(o_ref.dtype)


def _pick_tile(dim, target, base):
    """Tile size for `dim`: the whole dim if it is small, else the largest
    multiple-of-`base` divisor of `dim` that is <= target."""
    if dim <= target:
        return dim
    t = (target // base) * base
    while t >= base:
        if dim % t == 0:
            return t
        t -= base
    # TODO(synk): pad the array to a 128-multiple instead of falling back to the
    # full dim (full-dim fallback can blow VMEM for huge non-divisible dims).
    return dim


@functools.partial(
    jax.jit,
    static_argnames=("comm_op", "rank", "world_size", "tm", "tn", "tk"))
def overlap_row_parallel_forward(x_shards, w_shards, *, comm_op="all_reduce",
                                 rank=0, world_size=1,
                                 # Tile *targets* (clamped to divisors / full dims).
                                 # 512x1024 output tiles give >300 FLOP/byte per step
                                 # and the double-buffered working set stays ~10-20 MiB,
                                 # safe even under v7x's 64 MiB VMEM.
                                 tm=512, tn=1024, tk=1024):
    """x_shards: (R, M, K) bf16, w_shards: (R, N, K) bf16 -> bf16 output."""
    x_shards = x_shards.astype(jnp.bfloat16)
    w_shards = w_shards.astype(jnp.bfloat16)

    R, M, K = x_shards.shape
    Rw, N, Kw = w_shards.shape
    assert (Rw, Kw) == (R, K)

    if comm_op == "all_reduce":
        m_out, row_off = M, 0
    elif comm_op == "reduce_scatter":
        assert M % world_size == 0
        m_out = M // world_size
        row_off = rank * m_out            # compute only this rank's row slice
    else:
        raise ValueError(f"unknown comm_op {comm_op!r}")

    # Tile selection: collapse small dims to a single tile (so the reused operand
    # streams exactly once), otherwise use large 128-multiple tiles.
    tm = _pick_tile(m_out, tm, 8)
    tn = _pick_tile(N, tn, 128)           # lane-dense output tiles
    tk = _pick_tile(K, tk, 128)

    # v7x has 2 TensorCores: try to keep the parallel (i, j) grid extent >= 2.
    if (m_out // tm) * (N // tn) < 2 and tn % 256 == 0:
        tn //= 2

    assert m_out % tm == 0 and N % tn == 0 and K % tk == 0
    assert row_off % tm == 0, "rank row offset must be tile-aligned"
    row_blk = row_off // tm               # static block offset along M for this rank

    grid = (m_out // tm, N // tn, R, K // tk)

    # Advisory cost estimate for XLA scheduling around the custom call.
    bytes_accessed = (R * m_out * K * 2 * (N // tn)      # x re-streamed per j-tile
                      + R * N * K * 2 * (m_out // tm)    # w re-streamed per i-tile
                      + m_out * N * 2)                   # single output writeback
    cost = pl.CostEstimate(flops=2 * m_out * N * K * R,
                           transcendentals=0,
                           bytes_accessed=int(bytes_accessed))

    # Explicit VMEM budget: double-buffered bf16 inputs + bf16 output + f32 acc.
    working_set = (2 * (tm * tk + tn * tk) * 2
                   + 2 * tm * tn * 2
                   + tm * tn * 4)
    vmem_limit = min(max(int(1.25 * working_set) + (4 << 20), 32 << 20), 100 << 20)

    return pl.pallas_call(
        _gemm_reduce_kernel,
        out_shape=jax.ShapeDtypeStruct((m_out, N), jnp.bfloat16),
        grid_spec=pltpu.PrefetchScalarGridSpec(
            num_scalar_prefetch=0,
            grid=grid,
            in_specs=[
                # rank r's activation tile, offset to this rank's row slice.
                pl.BlockSpec((None, tm, tk),
                             lambda i, j, r, k: (r, i + row_blk, k)),
                # rank r's weight tile, (tn, tk): contraction axis last (lanes).
                pl.BlockSpec((None, tn, tk),
                             lambda i, j, r, k: (r, j, k)),
            ],
            # Same output block across the (rank, K) reduction axes -> output tile
            # and f32 accumulator stay VMEM-resident, written back once per (i, j).
            out_specs=pl.BlockSpec((tm, tn), lambda i, j, r, k: (i, j)),
            scratch_shapes=[pltpu.VMEM((tm, tn), jnp.float32)],
        ),
        compiler_params=pltpu.CompilerParams(
            # M/N tile axes are independent (shardable across v7x's two TCs);
            # rank and K-tile axes form the reduction.
            dimension_semantics=("parallel", "parallel", "arbitrary", "arbitrary"),
            vmem_limit_bytes=vmem_limit),
        cost_estimate=cost,
    )(x_shards, w_shards)


if __name__ == "__main__":
    key = jax.random.PRNGKey(0)
    world_size = 2
    M = 16              # rows of activations (x.size(0))
    in_features = 128   # per-rank K (row-parallel shard of the hidden dim)
    out_features = 128  # N

    kx, kw = jax.random.split(key)
    x_shards = jax.random.normal(
        kx, (world_size, M, in_features), dtype=jnp.float32).astype(jnp.bfloat16)
    w_shards = jax.random.normal(
        kw, (world_size, out_features, in_features), dtype=jnp.float32).astype(jnp.bfloat16)

    # --- all_reduce path -----------------------------------------------------
    out_ar = overlap_row_parallel_forward(
        x_shards, w_shards, comm_op="all_reduce", world_size=world_size)
    out_ar = jax.block_until_ready(out_ar)
    assert out_ar.shape == (M, out_features) and out_ar.dtype == jnp.bfloat16

    # --- reduce_scatter path (each rank computes only its row slice) ---------
    per = M // world_size
    outs_rs = []
    for r in range(world_size):
        o = overlap_row_parallel_forward(
            x_shards, w_shards, comm_op="reduce_scatter",
            rank=r, world_size=world_size)
        o = jax.block_until_ready(o)
        assert o.shape == (per, out_features) and o.dtype == jnp.bfloat16
        outs_rs.append(o)

    # Reference check against plain JAX: f32 math on the same bf16 inputs, so the
    # only expected error is the final bf16 output rounding (+ accumulation order).
    ref = jnp.zeros((M, out_features), jnp.float32)
    for r in range(world_size):
        ref = ref + x_shards[r].astype(jnp.float32) @ w_shards[r].astype(jnp.float32).T

    assert jnp.allclose(out_ar.astype(jnp.float32), ref, atol=5e-2, rtol=2e-2)
    for r in range(world_size):
        assert jnp.allclose(outs_rs[r].astype(jnp.float32),
                            ref[r * per:(r + 1) * per], atol=5e-2, rtol=2e-2)

    print("KERNEL_OK")
</pallas_src>

<mosaic_0001>
module attributes {stable_mosaic.version = 11 : i64} {
  func.func @_gemm_reduce_kernel(%arg0: i32, %arg1: i32, %arg2: i32, %arg3: i32, %arg4: memref<1x16x128xbf16, #tpu.memory_space<vmem>>, %arg5: memref<1x128x128xbf16, #tpu.memory_space<vmem>>, %arg6: memref<16x128xbf16, #tpu.memory_space<vmem>>, %arg7: memref<16x128xf32, #tpu.memory_space<vmem>>) attributes {dimension_semantics = [#tpu.dimension_semantics<parallel>, #tpu.dimension_semantics<parallel>, #tpu.dimension_semantics<arbitrary>, #tpu.dimension_semantics<arbitrary>], iteration_bounds = array<i64: 1, 1, 2, 1>, scalar_prefetch = 0 : i64, scratch_operands = 1 : i64, tpu.core_type = #tpu.core_type<tc>, window_params = [{transform_indices = @transform_0, window_bounds = array<i64: 1, 16, 128>}, {transform_indices = @transform_1, window_bounds = array<i64: 1, 128, 128>}, {transform_indices = @transform_2, window_bounds = array<i64: 16, 128>}]} {
    %c0_i32 = arith.constant 0 : i32
    %0 = arith.cmpi eq, %arg2, %c0_i32 : i32
    %c0_i32_0 = arith.constant 0 : i32
    %1 = arith.cmpi eq, %arg3, %c0_i32_0 : i32
    %2 = arith.andi %0, %1 : i1
    %3 = arith.extui %2 : i1 to i32
    %c0_i32_1 = arith.constant 0 : i32
    %4 = arith.cmpi ne, %3, %c0_i32_1 : i32
    scf.if %4 {
      %cst_13 = arith.constant 0.000000e+00 : f32
      %18 = vector.broadcast %cst_13 : f32 to vector<16x128xf32>
      %c0_14 = arith.constant 0 : index
      %c0_15 = arith.constant 0 : index
      %19 = vector.load %arg7[%c0_14, %c0_15] : memref<16x128xf32, #tpu.memory_space<vmem>>, vector<16x128xf32>
      tpu.vector_store %arg7[%c0_14, %c0_15], %18 {strides = array<i32>} : memref<16x128xf32, #tpu.memory_space<vmem>>, vector<16x128xf32>,
    } else {
    }
    %c0 = arith.constant 0 : index
    %c0_2 = arith.constant 0 : index
    %5 = vector.load %arg7[%c0, %c0_2] : memref<16x128xf32, #tpu.memory_space<vmem>>, vector<16x128xf32>
    %c0_3 = arith.constant 0 : index
    %c0_4 = arith.constant 0 : index
    %c0_5 = arith.constant 0 : index
    %6 = vector.load %arg4[%c0_3, %c0_4, %c0_5] : memref<1x16x128xbf16, #tpu.memory_space<vmem>>, vector<1x16x128xbf16>
    %7 = vector.shape_cast %6 : vector<1x16x128xbf16> to vector<16x128xbf16>
    %c0_6 = arith.constant 0 : index
    %c0_7 = arith.constant 0 : index
    %c0_8 = arith.constant 0 : index
    %8 = vector.load %arg5[%c0_6, %c0_7, %c0_8] : memref<1x128x128xbf16, #tpu.memory_space<vmem>>, vector<1x128x128xbf16>
    %9 = vector.shape_cast %8 : vector<1x128x128xbf16> to vector<128x128xbf16>
    %cst = arith.constant dense<0.000000e+00> : vector<16x128xf32>
    %10 = tpu.matmul %7, %9, %cst {dimension_numbers = #tpu.dot_dimension_numbers<[1], [1], [0], [0], [0, 0, 1, 0], [], []>} : vector<16x128xbf16>, vector<128x128xbf16>, vector<16x128xf32> -> vector<16x128xf32>
    %11 = arith.addf %5, %10 : vector<16x128xf32>
    %c0_9 = arith.constant 0 : index
    %c0_10 = arith.constant 0 : index
    %12 = vector.load %arg7[%c0_9, %c0_10] : memref<16x128xf32, #tpu.memory_space<vmem>>, vector<16x128xf32>
    tpu.vector_store %arg7[%c0_9, %c0_10], %11 {strides = array<i32>} : memref<16x128xf32, #tpu.memory_space<vmem>>, vector<16x128xf32>,
    %c1_i32 = arith.constant 1 : i32
    %13 = arith.cmpi eq, %arg2, %c1_i32 : i32
    %c0_i32_11 = arith.constant 0 : i32
    %14 = arith.cmpi eq, %arg3, %c0_i32_11 : i32
    %15 = arith.andi %13, %14 : i1
    %16 = arith.extui %15 : i1 to i32
    %c0_i32_12 = arith.constant 0 : i32
    %17 = arith.cmpi ne, %16, %c0_i32_12 : i32
    scf.if %17 {
      %c0_13 = arith.constant 0 : index
      %c0_14 = arith.constant 0 : index
      %18 = vector.load %arg7[%c0_13, %c0_14] : memref<16x128xf32, #tpu.memory_space<vmem>>, vector<16x128xf32>
      %19 = arith.truncf %18 : vector<16x128xf32> to vector<16x128xbf16>
      %c0_15 = arith.constant 0 : index
      %c0_16 = arith.constant 0 : index
      %20 = vector.load %arg6[%c0_15, %c0_16] : memref<16x128xbf16, #tpu.memory_space<vmem>>, vector<16x128xbf16>
      tpu.vector_store %arg6[%c0_15, %c0_16], %19 {strides = array<i32>} : memref<16x128xbf16, #tpu.memory_space<vmem>>, vector<16x128xbf16>,
    } else {
    }
    return
  }
  func.func @transform_0(%arg0: i32, %arg1: i32, %arg2: i32, %arg3: i32) -> (i32, i32, i32) {
    %c0_i32 = arith.constant 0 : i32
    %0 = arith.addi %arg0, %c0_i32 : i32
    %c0_i32_0 = arith.constant 0 : i32
    return %arg2, %0, %arg3 : i32, i32, i32
  }
  func.func @transform_1(%arg0: i32, %arg1: i32, %arg2: i32, %arg3: i32) -> (i32, i32, i32) {
    %c0_i32 = arith.constant 0 : i32
    return %arg2, %arg1, %arg3 : i32, i32, i32
  }
  func.func @transform_2(%arg0: i32, %arg1: i32, %arg2: i32, %arg3: i32) -> (i32, i32) {
    %c0_i32 = arith.constant 0 : i32
    return %arg0, %arg1 : i32, i32
  }
}

</mosaic_0001>

<llo_original>
// kernel: overlap_row_parallel_forward.1
$region0: #{overlap_row_parallel_forward.1}
  #allocation0 [shape = 'u32[]', space=smem, size = 0x4, offset = 0x4, fixed_abs, tag = 'smem constant byte address 0x4 - core index']
  #allocation1 [shape = 'u32[144,128]{1,0:T(1,128)}', space=vmem, size = 0x12000, scoped, tag = 'internal scratch']
  #allocation2 [shape = 'f32[16,128]{1,0:T(8,128)}', space=vmem, size = 0x2000, scoped, tag = 'scratch operand']
  %s0 = inlined_call_operand.hbm [shape: bf16[2,16,128], index: 0, kind: input, shape index: {}]
  %s1 = inlined_call_operand.hbm [shape: bf16[2,128,128], index: 1, kind: input, shape index: {}]
  %s2 = inlined_call_operand.hbm [shape: bf16[16,128], index: 2, kind: output, shape index: {}]
  %s3 = sld [smem:[#allocation0]]
  $region57: #{overlap_row_parallel_forward.1} parent=0
    _
  %s5 = ssub.s32 1, %s3
  %s6 = scalar_select 0, %s5, %s3
  $region1: #{overlap_row_parallel_forward.1} parent=0
    #allocation3 [shape = 'u8[8192]{0}', space=vmem, size = 0x2000, scoped, tag = 'input window, operand 0']
    #allocation4 [shape = 's32[2]{0}', space=sflag, size = 0x8, scoped, tag = 'scoped memory for overlap_row_parallel_forward.1']
    #allocation5 [shape = 's32[2]{0}', space=sflag, size = 0x8, scoped, tag = 'scoped memory for overlap_row_parallel_forward.1']
    #allocation6 [shape = 'u8[65536]{0}', space=vmem, size = 0x10000, scoped, tag = 'input window, operand 1']
    #allocation7 [shape = 's32[2]{0}', space=sflag, size = 0x8, scoped, tag = 'scoped memory for overlap_row_parallel_forward.1']
    #allocation8 [shape = 'u8[4096]{0}', space=vmem, size = 0x1000, scoped, tag = 'output window, operand 0, single buffered']
    %7 = vsyncpa [#allocation4], 0
    %s8 = scalar_lea.sflag [#allocation4], 1
    %9 = vsyncpa %s8, 0
    %10 = vsyncpa [#allocation7], 0
    %s11 = scalar_lea.sflag [#allocation7], 1
    %12 = vsyncpa %s11, 0
    %13 = vsyncpa [#allocation5], 0
    loop: start=0, step=1, limit=4
    $region2: #{overlap_row_parallel_forward.1} parent=1 // loop_pre_header
      _
    $region3: #{overlap_row_parallel_forward.1} parent=1 // loop_header
      %s15 = sphi 0, %s19
      %p16 = scmp.ge.s32.totalorder %s15, 4
      %s22 = sphi 0, %s48
      %s23 = sphi 0, %s44
      %s24 = sphi 0, %s40
      %s25 = sphi 0, %s36
      %s26 = sphi 0, %s22
      %s27 = sphi 0, %s23
      %s28 = sphi 0, %s24
      %s29 = sphi 0, %s25
      %s30 = sphi 0, %s26
      %s31 = sphi 0, %s27
      %s32 = sphi 0, %s28
      %s33 = sphi 0, %s29
      %s55 = sphi 0, %s57
      %s58 = sphi 0, %s55
      %s59 = sphi 0, %s58
      %s75 = sphi 0, %s59
      %s85 = sphi 0, %s87
      %s88 = sphi 0, %s85
      %s89 = sphi 0, %s88
      %s105 = sphi 0, %s89
      %s113 = sphi 0, %s115
      %s116 = sphi 0, %s113
      %s117 = sphi 0, %s116
      %s133 = sphi 0, %s117
    $region4: #{overlap_row_parallel_forward.1} parent=1 // loop_header_branch
      %18 = sbr.rel (%p16) target = $region8
    $region5: #{overlap_row_parallel_forward.1} parent=1 // loop_body
      %s20 = ssub.s32 %s15, 1
      %s21 = ssub.s32 %s15, 2
      %s34 = sadd.s32 1, %s25
      %p35 = scmp.ge.s32.totalorder %s34, 1
      %s36 = scalar_select %p35, 0, %s34
      %s37 = sadd.s32 1, %s24
      %s38 = scalar_select %p35, %s37, %s24
      %p39 = scmp.ge.s32.totalorder %s38, 2
      %s40 = scalar_select %p39, 0, %s38
      %s41 = sadd.s32 1, %s23
      %s42 = scalar_select %p39, %s41, %s23
      %p43 = scmp.ge.s32.totalorder %s42, 1
      %s44 = scalar_select %p43, 0, %s42
      %s45 = sadd.s32 1, %s22
      %s46 = scalar_select %p43, %s45, %s22
      %p47 = scmp.ge.s32.totalorder %s46, 1
      %s48 = scalar_select %p47, 0, %s46
      %s49 = ssub.s32 %s24, %s40
      %s50 = ssub.s32 %s22, %s48
      %s51 = sor.u32 %s49, %s50
      %s52 = ssub.s32 %s25, %s36
      %s53 = sor.u32 %s51, %s52
      %p54 = scmp.eq.s32.totalorder %s53, 0
      %s56 = sadd.s32 %s55, 1
      %s57 = scalar_select %p54, %s55, %s56
      %p60 = pneg %p54
      %p61 = scmp.eq.s32.totalorder %s15, 1
      %p62 = por %p60, %p61
      %p63 = scmp.ne.s32.totalorder %s55, %s58
      %p64 = scmp.eq.s32.totalorder %s15, 0
      %p65 = por %p63, %p64
      %p66 = scmp.ne.s32.totalorder %s55, %s58
      %p67 = scmp.eq.s32.totalorder %s20, 1
      %p68 = por %p66, %p67
      %p69 = scmp.ne.s32.totalorder %s58, %s59
      %p70 = scmp.eq.s32.totalorder %s20, 0
      %p71 = por %p69, %p70
      %p72 = scmp.ne.s32.totalorder %s58, %s59
      %p73 = scmp.eq.s32.totalorder %s21, 1
      %p74 = por %p72, %p73
      %p76 = scmp.ne.s32.totalorder %s59, %s75
      %p77 = scmp.eq.s32.totalorder %s21, 0
      %p78 = por %p76, %p77
      %s79 = ssub.s32 %s24, %s40
      %s80 = ssub.s32 %s23, %s44
      %s81 = sor.u32 %s79, %s80
      %s82 = ssub.s32 %s25, %s36
      %s83 = sor.u32 %s81, %s82
      %p84 = scmp.eq.s32.totalorder %s83, 0
      %s86 = sadd.s32 %s85, 1
      %s87 = scalar_select %p84, %s85, %s86
      %p90 = pneg %p84
      %p91 = scmp.eq.s32.totalorder %s15, 1
      %p92 = por %p90, %p91
      %p93 = scmp.ne.s32.totalorder %s85, %s88
      %p94 = scmp.eq.s32.totalorder %s15, 0
      %p95 = por %p93, %p94
      %p96 = scmp.ne.s32.totalorder %s85, %s88
      %p97 = scmp.eq.s32.totalorder %s20, 1
      %p98 = por %p96, %p97
      %p99 = scmp.ne.s32.totalorder %s88, %s89
      %p100 = scmp.eq.s32.totalorder %s20, 0
      %p101 = por %p99, %p100
      %p102 = scmp.ne.s32.totalorder %s88, %s89
      %p103 = scmp.eq.s32.totalorder %s21, 1
      %p104 = por %p102, %p103
      %p106 = scmp.ne.s32.totalorder %s89, %s105
      %p107 = scmp.eq.s32.totalorder %s21, 0
      %p108 = por %p106, %p107
      %s109 = ssub.s32 %s22, %s48
      %s110 = ssub.s32 %s23, %s44
      %s111 = sor.u32 %s109, %s110
      %p112 = scmp.eq.s32.totalorder %s111, 0
      %s114 = sadd.s32 %s113, 1
      %s115 = scalar_select %p112, %s113, %s114
      %p118 = pneg %p112
      %p119 = scmp.eq.s32.totalorder %s15, 1
      %p120 = por %p118, %p119
      %p121 = scmp.ne.s32.totalorder %s113, %s116
      %p122 = scmp.eq.s32.totalorder %s15, 0
      %p123 = por %p121, %p122
      %p124 = scmp.ne.s32.totalorder %s113, %s116
      %p125 = scmp.eq.s32.totalorder %s20, 1
      %p126 = por %p124, %p125
      %p127 = scmp.ne.s32.totalorder %s116, %s117
      %p128 = scmp.eq.s32.totalorder %s20, 0
      %p129 = por %p127, %p128
      %p130 = scmp.ne.s32.totalorder %s116, %s117
      %p131 = scmp.eq.s32.totalorder %s21, 1
      %p132 = por %p130, %p131
      %p134 = scmp.ne.s32.totalorder %s117, %s133
      %p135 = scmp.eq.s32.totalorder %s21, 0
      %p136 = por %p134, %p135
      %p137 = scmp.le.s32.totalorder 1, %s15
      %p138 = scmp.lt.s32.totalorder %s15, 3
      %p139 = pnand %p137, %p138
      %p140 = pneg %p139
      // Predicated region
      $region9: #{overlap_row_parallel_forward.1} parent=5 // pred_check
        _
      $region10: #{overlap_row_parallel_forward.1} parent=5 // pred_check_branch
        %142 = sbr.rel (%p139) target = $region12
      $region11: #{overlap_row_parallel_forward.1} parent=5 // pred_region
        %s143 = ssub.s32 %s15, 1
      $region12: #{overlap_row_parallel_forward.1} parent=5 // pred_fallthru
        _
      %p144 = scmp.lt.s32.totalorder %s15, 2
      // Predicated region
      $region13: #{overlap_row_parallel_forward.1} parent=5 // pred_check
        %p145 = pneg %p144
      $region14: #{overlap_row_parallel_forward.1} parent=5 // pred_check_branch
        %147 = sbr.rel (%p145) target = $region16
      $region15: #{overlap_row_parallel_forward.1} parent=5 // pred_region
        // Predicated region
        $region17: #{overlap_row_parallel_forward.1} parent=15 // pred_check
          %p148 = pneg %p65
        $region18: #{overlap_row_parallel_forward.1} parent=15 // pred_check_branch
          %150 = sbr.rel (%p148) target = $region20
        $region19: #{overlap_row_parallel_forward.1} parent=15 // pred_region
          %s151 = sand.u32 %s55, 1
          %s152 = scalar_lea.sflag [#allocation4], %s151
          %s153 = sand.u32 %s55, 1
          %s154 = smul.addr %s153, 8
          %s155 = scalar_lea.vmem [#allocation3], %s154
          %s156 = smul.u32 2, %s22
          %s158 = ssub.s32 128, 128
          %159 = vsyncadd %s152, %s158
          %s160 = sadd.s32 %s25, %s156
          %s161 = smul.addr %s24, 2
          %s162 = sadd.s32 %s160, %s161
          %s163 = smul.addr %s162, 64
          %s164 = scalar_lea.hbm %s0, %s163
          %s165 = sshll.u32 %s155, 4
          %s166 = int_to_ptr.vmem [resolvable:$true] %s165
          %171 = dma.hbm_to_vmem [thread:$0]  %s164, 128, %s166, %s152, 64, 64, 4
        $region20: #{overlap_row_parallel_forward.1} parent=15 // pred_fallthru
          _
        // Predicated region
        $region21: #{overlap_row_parallel_forward.1} parent=15 // pred_check
          %p172 = pneg %p95
        $region22: #{overlap_row_parallel_forward.1} parent=15 // pred_check_branch
          %174 = sbr.rel (%p172) target = $region24
        $region23: #{overlap_row_parallel_forward.1} parent=15 // pred_region
          %s175 = sand.u32 %s85, 1
          %s176 = scalar_lea.sflag [#allocation7], %s175
          %s177 = sand.u32 %s85, 1
          %s178 = smul.addr %s177, 64
          %s179 = scalar_lea.vmem [#allocation6], %s178
          %s180 = smul.u32 16, %s23
          %s182 = ssub.s32 1024, 1024
          %183 = vsyncadd %s176, %s182
          %s184 = sadd.s32 %s25, %s180
          %s185 = smul.addr %s24, 16
          %s186 = sadd.s32 %s184, %s185
          %s187 = smul.addr %s186, 64
          %s188 = scalar_lea.hbm %s1, %s187
          %s189 = sshll.u32 %s179, 4
          %s190 = int_to_ptr.vmem [resolvable:$true] %s189
          %195 = dma.hbm_to_vmem [thread:$0]  %s188, 1024, %s190, %s176, 64, 64, 4
        $region24: #{overlap_row_parallel_forward.1} parent=15 // pred_fallthru
          _
      $region16: #{overlap_row_parallel_forward.1} parent=5 // pred_fallthru
        _
      %p196 = scmp.le.s32.totalorder 1, %s15
      %p197 = scmp.lt.s32.totalorder %s15, 3
      %p198 = pnand %p196, %p197
      %p199 = pneg %p198
      // Predicated region
      $region25: #{overlap_row_parallel_forward.1} parent=5 // pred_check
        _
      $region26: #{overlap_row_parallel_forward.1} parent=5 // pred_check_branch
        %201 = sbr.rel (%p198) target = $region28
      $region27: #{overlap_row_parallel_forward.1} parent=5 // pred_region
        %s202 = ssub.s32 %s15, 1
        %s203 = sand.u32 %s58, 1
        %s204 = scalar_lea.sflag [#allocation4], %s203
        %s205 = sand.u32 %s58, 1
        %s206 = smul.addr %s205, 8
        %s207 = scalar_lea.vmem [#allocation3], %s206
        // Predicated region
        $region29: #{overlap_row_parallel_forward.1} parent=27 // pred_check
          %p208 = pneg %p71
        $region30: #{overlap_row_parallel_forward.1} parent=27 // pred_check_branch
          %210 = sbr.rel (%p208) target = $region32
        $region31: #{overlap_row_parallel_forward.1} parent=27 // pred_region
          %211 = dma.done %s204, 128
        $region32: #{overlap_row_parallel_forward.1} parent=27 // pred_fallthru
          _
        %s212 = sand.u32 %s88, 1
        %s213 = scalar_lea.sflag [#allocation7], %s212
        %s214 = sand.u32 %s88, 1
        %s215 = smul.addr %s214, 64
        %s216 = scalar_lea.vmem [#allocation6], %s215
        // Predicated region
        $region33: #{overlap_row_parallel_forward.1} parent=27 // pred_check
          %p217 = pneg %p101
        $region34: #{overlap_row_parallel_forward.1} parent=27 // pred_check_branch
          %219 = sbr.rel (%p217) target = $region36
        $region35: #{overlap_row_parallel_forward.1} parent=27 // pred_region
          %220 = dma.done %s213, 1024
        $region36: #{overlap_row_parallel_forward.1} parent=27 // pred_fallthru
          _
        %s221 = sand.u32 %s58, 1
        %s222 = scalar_lea.sflag [#allocation4], %s221
        %s223 = sand.u32 %s58, 1
        %s224 = smul.addr %s223, 8
        %s225 = scalar_lea.vmem [#allocation3], %s224
        %p226 = pneg %p71
        %p227 = pneg %p68
        %s228 = sand.u32 %s88, 1
        %s229 = scalar_lea.sflag [#allocation7], %s228
        %s230 = sand.u32 %s88, 1
        %s231 = smul.addr %s230, 64
        %s232 = scalar_lea.vmem [#allocation6], %s231
        %p233 = pneg %p101
        %p234 = pneg %p98
        %p235 = pneg %p129
        %p236 = pneg %p126
        %s237 = smul.u32 2, %s26
        %s238 = smul.u32 16, %s27
        %s239 = smul.u32 2, %s26
        %p241 = scmp.eq.s32.totalorder %s28, 0
        %p242 = scmp.eq.s32.totalorder %s29, 0
        %p243 = pnand %p241, %p242
        %p244 = pneg %p243
        // Predicated region
        $region37: #{overlap_row_parallel_forward.1} parent=27 // pred_check
          _
        $region38: #{overlap_row_parallel_forward.1} parent=27 // pred_check_branch
          %246 = sbr.rel (%p243) target = $region40
        $region39: #{overlap_row_parallel_forward.1} parent=27 // pred_region
          %247 = vst [vmem:[#allocation2] sm:$0xff] 0.0
          %248 = vst [vmem:[#allocation2 + $0x8] sm:$0xff] 0.0
        $region40: #{overlap_row_parallel_forward.1} parent=27 // pred_fallthru
          _
        %v249 = vld [vmem:[#allocation2] sm:$0xff]
        %v250 = vld [vmem:[#allocation2 + $0x8] sm:$0xff]
        %v251 = vld [vmem:[%s207] sm:$0xf]
        %v252 = vld [vmem:[%s207 + $0x4] sm:$0xf]
        %v253 = vld [vmem:[%s216] sm:$0xf]
        %v254 = vld [vmem:[%s216 + $0x4] sm:$0xf]
        %v255 = vld [vmem:[%s216 + $0x8] sm:$0xf]
        %v256 = vld [vmem:[%s216 + $0xc] sm:$0xf]
        %v257 = vld [vmem:[%s216 + $0x10] sm:$0xf]
        %v258 = vld [vmem:[%s216 + $0x14] sm:$0xf]
        %v259 = vld [vmem:[%s216 + $0x18] sm:$0xf]
        %v260 = vld [vmem:[%s216 + $0x1c] sm:$0xf]
        %v261 = vld [vmem:[%s216 + $0x20] sm:$0xf]
        %v262 = vld [vmem:[%s216 + $0x24] sm:$0xf]
        %v263 = vld [vmem:[%s216 + $0x28] sm:$0xf]
        %v264 = vld [vmem:[%s216 + $0x2c] sm:$0xf]
        %v265 = vld [vmem:[%s216 + $0x30] sm:$0xf]
        %v266 = vld [vmem:[%s216 + $0x34] sm:$0xf]
        %v267 = vld [vmem:[%s216 + $0x38] sm:$0xf]
        %v268 = vld [vmem:[%s216 + $0x3c] sm:$0xf]
        %v271 = vunpack.c.l.b16 %v251
        %v272 = vunpack.c.l.b16 %v252
        %v273 = vpack.c.b16 %v272, %v271
        %v291 = vunpack.c.l.b16 %v253
        %v292 = vunpack.c.l.b16 %v254
        %v293 = vunpack.c.l.b16 %v255
        %v294 = vunpack.c.l.b16 %v256
        %v295 = vunpack.c.l.b16 %v257
        %v296 = vunpack.c.l.b16 %v258
        %v297 = vunpack.c.l.b16 %v259
        %v298 = vunpack.c.l.b16 %v260
        %v299 = vunpack.c.l.b16 %v261
        %v300 = vunpack.c.l.b16 %v262
        %v301 = vunpack.c.l.b16 %v263
        %v302 = vunpack.c.l.b16 %v264
        %v303 = vunpack.c.l.b16 %v265
        %v304 = vunpack.c.l.b16 %v266
        %v305 = vunpack.c.l.b16 %v267
        %v306 = vunpack.c.l.b16 %v268
        %v307 = vpack.c.b16 %v292, %v291
        %v308 = vpack.c.b16 %v294, %v293
        %v309 = vpack.c.b16 %v296, %v295
        %v310 = vpack.c.b16 %v298, %v297
        %v311 = vpack.c.b16 %v300, %v299
        %v312 = vpack.c.b16 %v302, %v301
        %v313 = vpack.c.b16 %v304, %v303
        %v314 = vpack.c.b16 %v306, %v305
        %323 = vmatprep.subr.bf16.mxu0 0
        %324 = vmatpush1.bf16.xpose.msra.mxu0 %v307
        %325 = vmatprep.subr.bf16.mxu0 0
        %326 = vmatpush1.bf16.xpose.msra.mxu0 %v308
        %327 = vmatprep.subr.bf16.mxu0 0
        %328 = vmatpush1.bf16.xpose.msra.mxu0 %v309
        %329 = vmatprep.subr.bf16.mxu0 0
        %330 = vmatpush1.bf16.xpose.msra.mxu0 %v310
        %331 = vmatprep.subr.bf16.mxu0 0
        %332 = vmatpush1.bf16.xpose.msra.mxu0 %v311
        %333 = vmatprep.subr.bf16.mxu0 0
        %334 = vmatpush1.bf16.xpose.msra.mxu0 %v312
        %335 = vmatprep.subr.bf16.mxu0 0
        %336 = vmatpush1.bf16.xpose.msra.mxu0 %v313
        %337 = vmatprep.subr.bf16.mxu0 0
        %338 = vmatpush1.bf16.xpose.msra.mxu0 %v314
        %339 = vmatprep.subr.bf16.mxu0 0
        %340 = vmatpush1.bf16.xpose.msra.mxu0 0
        %341 = vmatprep.subr.bf16.mxu0 0
        %342 = vmatpush1.bf16.xpose.msra.mxu0 0
        %343 = vmatprep.subr.bf16.mxu0 0
        %344 = vmatpush1.bf16.xpose.msra.mxu0 0
        %345 = vmatprep.subr.bf16.mxu0 0
        %346 = vmatpush1.bf16.xpose.msra.mxu0 0
        %347 = vmatprep.subr.bf16.mxu0 0
        %348 = vmatpush1.bf16.xpose.msra.mxu0 0
        %349 = vmatprep.subr.bf16.mxu0 0
        %350 = vmatpush1.bf16.xpose.msra.mxu0 0
        %351 = vmatprep.subr.bf16.mxu0 0
        %352 = vmatpush1.bf16.xpose.msra.mxu0 0
        %353 = vmatprep.subr.bf16.mxu0 0
        %354 = vmatpush1.bf16.xpose.msra.mxu0 0
        %355 = vmatprep.mubr.bf16.mxu0 0
        %356 = vmatmul.mubr.bf16.gmra.mrb[0].mxu0 %v273
        %v357 = vpop.f32.mrb[0].mxu0
        %v358 = vadd.f32 0.0, %v357
        %v359 = vpop.f32.mrb[0].mxu0
        %v360 = vpop.f32.mrb[0].mxu0
        %v361 = vadd.f32 0.0, %v360
        %v362 = vpop.f32.mrb[0].mxu0
        %363 = vdwg.mxu0
        %v364 = vadd.f32 %v249, %v358
        %v365 = vadd.f32 %v250, %v361
        %366 = vst [vmem:[#allocation2] sm:$0xff] %v364
        %367 = vst [vmem:[#allocation2 + $0x8] sm:$0xff] %v365
        %p368 = scmp.eq.s32.totalorder %s28, 1
        %p369 = pnand %p368, %p242
        %p370 = pneg %p369
        // Predicated region
        $region41: #{overlap_row_parallel_forward.1} parent=27 // pred_check
          _
        $region42: #{overlap_row_parallel_forward.1} parent=27 // pred_check_branch
          %372 = sbr.rel (%p369) target = $region44
        $region43: #{overlap_row_parallel_forward.1} parent=27 // pred_region
          %v373 = vld [vmem:[#allocation2] sm:$0xff]
          %v374 = vld [vmem:[#allocation2 + $0x8] sm:$0xff]
          %v375 = vpack.c.bf16 %v374, %v373
          %v377 = vunpack.c.l.b16 %v375
          %v378 = vunpack.c.h.b16 %v375
          %v379 = vpack.c.b16 %v377, %v377
          %v380 = vpack.c.b16 %v378, %v378
          %383 = vst [vmem:[#allocation8] sm:$0xf] %v379
          %384 = vst [vmem:[#allocation8 + $0x4] sm:$0xf] %v380
        $region44: #{overlap_row_parallel_forward.1} parent=27 // pred_fallthru
          _
        // Predicated region
        $region45: #{overlap_row_parallel_forward.1} parent=27 // pred_check
          %p385 = pneg %p126
        $region46: #{overlap_row_parallel_forward.1} parent=27 // pred_check_branch
          %387 = sbr.rel (%p385) target = $region48
        $region47: #{overlap_row_parallel_forward.1} parent=27 // pred_region
          %s388 = smul.u32 2, %s26
          %s390 = ssub.s32 128, 128
          %391 = vsyncadd [#allocation5], %s390
          %s392 = sadd.s32 %s27, %s388
          %s393 = smul.addr %s392, 64
          %s394 = scalar_lea.hbm %s2, %s393
          %s395 = sshll.u32 [#allocation8], 4
          %s396 = int_to_ptr.vmem [resolvable:$true] %s395
          %401 = dma.vmem_to_hbm [thread:$0]  %s396, 128, %s394, [#allocation5], 64, 64, 4
        $region48: #{overlap_row_parallel_forward.1} parent=27 // pred_fallthru
          _
        // Predicated region
        $region49: #{overlap_row_parallel_forward.1} parent=27 // pred_check
          %p402 = pneg %p126
        $region50: #{overlap_row_parallel_forward.1} parent=27 // pred_check_branch
          %404 = sbr.rel (%p402) target = $region52
        $region51: #{overlap_row_parallel_forward.1} parent=27 // pred_region
          %405 = dma.done [#allocation5], 128
        $region52: #{overlap_row_parallel_forward.1} parent=27 // pred_fallthru
          _
      $region28: #{overlap_row_parallel_forward.1} parent=5 // pred_fallthru
        _
      %p406 = scmp.le.s32.totalorder 2, %s15
      // Predicated region
      $region53: #{overlap_row_parallel_forward.1} parent=5 // pred_check
        %p407 = pneg %p406
      $region54: #{overlap_row_parallel_forward.1} parent=5 // pred_check_branch
        %409 = sbr.rel (%p407) target = $region56
      $region55: #{overlap_row_parallel_forward.1} parent=5 // pred_region
        %s410 = ssub.s32 %s15, 2
      $region56: #{overlap_row_parallel_forward.1} parent=5 // pred_fallthru
        _
    $region6: #{overlap_row_parallel_forward.1} parent=1 // loop_footer
      %s19 = sadd.s32 1, %s15
    $region7: #{overlap_row_parallel_forward.1} parent=1 // loop_footer_branch
      %14 = sbr.rel target = $region3
    $region8: #{overlap_row_parallel_forward.1} parent=1 // loop_exit
      _
    %411 = vsyncpa [#allocation4], 1
    %s412 = scalar_lea.sflag [#allocation4], 1
    %413 = vsyncpa %s412, 1
    %414 = vsyncpa [#allocation7], 1
    %s415 = scalar_lea.sflag [#allocation7], 1
    %416 = vsyncpa %s415, 1
    %417 = vsyncpa [#allocation5], 1
    %s418 = scalar_lea.sflag [#allocation5], 1
    %419 = vsyncpa %s418, 1

</llo_original>
